<compile_context>
chip_gen: v7x
topology: tpu7x:2x2x1
jax: 0.10.0
libtpu: 0.0.40
codegen_flags: <defaults>
</compile_context>

<pallas_src>
import functools

import jax
import jax.numpy as jnp
import numpy as np
from jax.experimental import pallas as pl
from jax.experimental.pallas import tpu as pltpu

LN_EPS = 1e-5  # nn.LayerNorm default eps (LayerNorm2d normalizes over channels)


def make_divisible(v, divisor=8, min_value=None):
    if min_value is None:
        min_value = divisor
    new_v = max(min_value, int(v + divisor / 2) // divisor * divisor)
    if new_v < 0.9 * v:
        new_v += divisor
    return new_v


def _gc_kernel(x_ref, wa_ref, ba_ref, wsq_ref, bsq_ref, g_ref, be_ref,
               wex_ref, bex_ref, o_ref, *, valid_hw):
    # x block: (Bt, C, HWp) -- channels on sublanes, spatial positions lane-dense.
    x = x_ref[...]

    # conv_attn: 1x1 conv C->1 as VPU multiply + sublane reduce (an MXU matmul
    # here would be a degenerate N=1 op).  f32 weights force f32 accumulation
    # via type promotion even when x is bf16.  b_attn is a scalar from SMEM.
    logits = (jnp.sum(x * wa_ref[...], axis=1, keepdims=True)
              + ba_ref[0])                                            # (Bt, 1, HWp)

    if valid_hw is not None:
        # Padded lanes (HW rounded up to a multiple of 128) masked to -inf so
        # they contribute exp(-inf)=0 to the softmax / pooled context.
        lane = jax.lax.broadcasted_iota(jnp.int32, logits.shape, 2)
        logits = jnp.where(lane < valid_hw, logits, -jnp.inf)

    # softmax over the spatial (lane) axis; the 1/sum normalization is applied
    # to the small pooled context below instead of the full attention map.
    m = jnp.max(logits, axis=-1, keepdims=True)
    e = jnp.exp(logits - m)                                           # (Bt, 1, HWp)
    denom = jnp.sum(e, axis=-1, keepdims=True)                        # (Bt, 1, 1)
    inv_denom = pl.reciprocal(denom[..., 0], approx=False)            # (Bt, 1)

    # context pooling: ctx[b, c] = sum_p x[b, c, p] * attn[b, p]
    ctx = jnp.sum(x * e, axis=-1) * inv_denom                         # (Bt, C) f32

    # conv_squeeze: 1x1 conv C->Cs  (a real (Bt, C) @ (C, Cs) thanks to batching)
    sq = jnp.dot(ctx, wsq_ref[...],
                 preferred_element_type=jnp.float32) + bsq_ref[...]   # (Bt, Cs)

    # LayerNorm2d over the channel dim (Cs) + affine, then relu
    mu = jnp.mean(sq, axis=-1, keepdims=True)
    var = jnp.mean((sq - mu) ** 2, axis=-1, keepdims=True)
    y = (sq - mu) * jax.lax.rsqrt(var + LN_EPS) * g_ref[...] + be_ref[...]
    y = jnp.maximum(y, 0.0)

    # conv_excite: 1x1 conv Cs->C
    ex = jnp.dot(y, wex_ref[...],
                 preferred_element_type=jnp.float32) + bex_ref[...]   # (Bt, C)

    # residual add: broadcast per-(batch, channel) excitation over all pixels;
    # HW-last output keeps the stores lane-dense (unmasked vst).
    o_ref[...] = (x + ex[:, :, None]).astype(o_ref.dtype)


def global_context(x_nchw, params, *, bt=None):
    B, C, H, W = x_nchw.shape
    HW = H * W
    Cs = params["w_sq"].shape[0]

    # NCHW -> (B, C, HW): pure reshape.  Pad HW to a multiple of 128 so both the
    # HBM<->VMEM DMAs and the output stores are lane-dense.
    HWp = ((HW + 127) // 128) * 128
    x = x_nchw.reshape(B, C, HW)
    if HWp != HW:
        x = jnp.pad(x, ((0, 0), (0, 0), (0, HWp - HW)))
    valid_hw = None if HWp == HW else HW

    f32 = jnp.float32
    wa = params["w_attn"].reshape(C, 1).astype(f32)      # broadcasts over (Bt, C, HWp)
    ba = params["b_attn"].reshape(1).astype(f32)         # scalar, lives in SMEM
    wsq = params["w_sq"].reshape(Cs, C).T.astype(f32)    # (C, Cs)
    bsq = params["b_sq"].reshape(1, Cs).astype(f32)
    g = params["ln_gamma"].reshape(1, Cs).astype(f32)
    be = params["ln_beta"].reshape(1, Cs).astype(f32)
    wex = params["w_ex"].reshape(C, Cs).T.astype(f32)    # (Cs, C)
    bex = params["b_ex"].reshape(1, C).astype(f32)

    # Generation-aware VMEM budget: ~75% of physical VMEM for data (+Mosaic headroom).
    try:
        vmem_cap = int(pltpu.get_tpu_info().vmem_capacity_bytes)
    except Exception:
        vmem_cap = 64 << 20          # conservative fallback (v7x physical VMEM)
    data_budget = int(vmem_cap * 0.75)

    itemsize = jnp.dtype(x.dtype).itemsize
    bytes_per_img = C * HWp * itemsize
    # Per-image VMEM cost in one grid step:
    #   x-in + out, double-buffered (4 buffers) + (bt,1,HWp) f32 softmax temps
    #   + an f32 working copy of x when activations are sub-32-bit.
    per_img_cost = (4 * bytes_per_img
                    + 3 * HWp * 4
                    + (C * HWp * 4 if itemsize < 4 else 0))

    if bt is None:
        bt_fit = max(1, data_budget // per_img_cost)
        bt_block = max(1, (2 << 20) // bytes_per_img)    # ~1-4 MiB x blocks
        target_steps = 4                                 # keep the DMA pipeline busy
        bt_steps = max(1, -(-B // target_steps))         # ceil(B / target_steps)
        cap = max(1, min(bt_fit, bt_block, bt_steps, B))
        divisors = [d for d in range(1, B + 1) if B % d == 0 and d <= cap]
        # Prefer an even grid length (balanced across v7x's two TensorCores),
        # then the largest block that fits.
        bt = max(divisors, key=lambda d: ((B // d) % 2 == 0, d))
    # TODO(synk): if a single image block (bt == 1) still exceeds the VMEM
    # budget, tile HW with a two-pass online-softmax structure instead.

    grid = (B // bt,)
    per_step_bytes = bt * per_img_cost
    vmem_limit = int(min(max(per_step_bytes + (4 << 20), 16 << 20),
                         int(vmem_cap * 0.75)))

    def full(shape):
        n = len(shape)
        return pl.BlockSpec(shape, lambda *_: (0,) * n)

    out = pl.pallas_call(
        functools.partial(_gc_kernel, valid_hw=valid_hw),
        out_shape=jax.ShapeDtypeStruct((B, C, HWp), x.dtype),
        grid_spec=pltpu.PrefetchScalarGridSpec(
            num_scalar_prefetch=0,
            grid=grid,
            in_specs=[
                pl.BlockSpec((bt, C, HWp), lambda b: (b, 0, 0)),     # x
                full((C, 1)),                                        # conv_attn w
                pl.BlockSpec(memory_space=pltpu.MemorySpace.SMEM),   # conv_attn b
                full((C, Cs)), full((1, Cs)),                        # conv_squeeze w^T, b
                full((1, Cs)), full((1, Cs)),                        # LN gamma, beta
                full((Cs, C)), full((1, C)),                         # conv_excite w^T, b
            ],
            out_specs=pl.BlockSpec((bt, C, HWp), lambda b: (b, 0, 0)),
        ),
        compiler_params=pltpu.CompilerParams(
            dimension_semantics=("parallel",),   # batch axis shards across v7x's 2 TCs
            vmem_limit_bytes=vmem_limit),
    )(x, wa, ba, wsq, bsq, g, be, wex, bex)

    if HWp != HW:
        out = out[:, :, :HW]
    return out.reshape(B, C, H, W)


def global_context_ref(x, p):
    """Pure-JAX reference mirroring the PyTorch forward exactly."""
    B, C, H, W = x.shape
    HW = H * W
    Cs = p["w_sq"].shape[0]
    xr = x.reshape(B, C, HW)
    logits = jnp.einsum("c,bcp->bp", p["w_attn"].reshape(C), xr) + p["b_attn"]
    attn = jax.nn.softmax(logits, axis=-1)                        # (B, HW)
    ctx = jnp.einsum("bcp,bp->bc", xr, attn)                      # (B, C)
    sq = ctx @ p["w_sq"].reshape(Cs, C).T + p["b_sq"]             # (B, Cs)
    mu = jnp.mean(sq, axis=-1, keepdims=True)
    var = jnp.mean((sq - mu) ** 2, axis=-1, keepdims=True)
    y = (sq - mu) / jnp.sqrt(var + LN_EPS) * p["ln_gamma"] + p["ln_beta"]
    y = jax.nn.relu(y)
    ex = y @ p["w_ex"].reshape(C, Cs).T + p["b_ex"]               # (B, C)
    return x + ex[:, :, None, None]


if __name__ == "__main__":
    B, C, H, W = 2, 16, 16, 16
    squeeze_ratio = 0.125
    Cs = make_divisible(C * squeeze_ratio)   # = 8

    key = jax.random.PRNGKey(0)
    ks = jax.random.split(key, 8)

    # Deterministic synthetic params (same shapes as the PyTorch module).
    # NOTE: the original reset_parameters() zeroes conv_excite.weight; we use
    # small random values so the squeeze/excite path is actually exercised.
    params = {
        "w_attn": jax.random.normal(ks[0], (1, C)) * np.sqrt(2.0 / C),  # kaiming fan_in
        "b_attn": jax.random.normal(ks[1], (1,)) * 0.1,
        "w_sq": jax.random.normal(ks[2], (Cs, C)) * 0.1,
        "b_sq": jax.random.normal(ks[3], (Cs,)) * 0.1,
        "ln_gamma": jnp.ones((Cs,), jnp.float32),
        "ln_beta": jnp.zeros((Cs,), jnp.float32),
        "w_ex": jax.random.normal(ks[4], (C, Cs)) * 0.1,
        "b_ex": jax.random.normal(ks[5], (C,)) * 0.1,
    }
    params = {k: v.astype(jnp.float32) for k, v in params.items()}

    x = jax.random.normal(ks[6], (B, C, H, W), dtype=jnp.float32)

    out = jax.block_until_ready(global_context(x, params))
    ref = jax.block_until_ready(global_context_ref(x, params))

    np.testing.assert_allclose(np.asarray(out), np.asarray(ref),
                               rtol=1e-5, atol=1e-5)
    print("KERNEL_OK")
</pallas_src>

<mosaic_0001>
module attributes {stable_mosaic.version = 11 : i64} {
  func.func @_gc_kernel(%arg0: i32, %arg1: memref<1x16x256xf32, #tpu.memory_space<vmem>>, %arg2: memref<16x1xf32, #tpu.memory_space<vmem>>, %arg3: memref<1xf32, #tpu.memory_space<smem>>, %arg4: memref<16x8xf32, #tpu.memory_space<vmem>>, %arg5: memref<1x8xf32, #tpu.memory_space<vmem>>, %arg6: memref<1x8xf32, #tpu.memory_space<vmem>>, %arg7: memref<1x8xf32, #tpu.memory_space<vmem>>, %arg8: memref<8x16xf32, #tpu.memory_space<vmem>>, %arg9: memref<1x16xf32, #tpu.memory_space<vmem>>, %arg10: memref<1x16x256xf32, #tpu.memory_space<vmem>>) attributes {dimension_semantics = [#tpu.dimension_semantics<parallel>], iteration_bounds = array<i64: 2>, scalar_prefetch = 0 : i64, scratch_operands = 0 : i64, tpu.core_type = #tpu.core_type<tc>, window_params = [{transform_indices = @transform_0, window_bounds = array<i64: 1, 16, 256>}, {pipeline_mode = #tpu.pipeline_mode<synchronous>, transform_indices = @transform_1, window_bounds = array<i64: 16, 1>}, {transform_indices = @transform_2, window_bounds = array<i64: 1>}, {pipeline_mode = #tpu.pipeline_mode<synchronous>, transform_indices = @transform_3, window_bounds = array<i64: 16, 8>}, {pipeline_mode = #tpu.pipeline_mode<synchronous>, transform_indices = @transform_4, window_bounds = array<i64: 1, 8>}, {pipeline_mode = #tpu.pipeline_mode<synchronous>, transform_indices = @transform_5, window_bounds = array<i64: 1, 8>}, {pipeline_mode = #tpu.pipeline_mode<synchronous>, transform_indices = @transform_6, window_bounds = array<i64: 1, 8>}, {pipeline_mode = #tpu.pipeline_mode<synchronous>, transform_indices = @transform_7, window_bounds = array<i64: 8, 16>}, {pipeline_mode = #tpu.pipeline_mode<synchronous>, transform_indices = @transform_8, window_bounds = array<i64: 1, 16>}, {transform_indices = @transform_9, window_bounds = array<i64: 1, 16, 256>}]} {
    %c0 = arith.constant 0 : index
    %c0_0 = arith.constant 0 : index
    %c0_1 = arith.constant 0 : index
    %0 = vector.load %arg1[%c0, %c0_0, %c0_1] : memref<1x16x256xf32, #tpu.memory_space<vmem>>, vector<1x16x256xf32>
    %c0_2 = arith.constant 0 : index
    %c0_3 = arith.constant 0 : index
    %1 = vector.load %arg2[%c0_2, %c0_3] : memref<16x1xf32, #tpu.memory_space<vmem>>, vector<16x1xf32>
    %2 = vector.shape_cast %1 : vector<16x1xf32> to vector<1x16x1xf32>
    %3 = vector.broadcast %2 : vector<1x16x1xf32> to vector<1x16x256xf32>
    %4 = arith.mulf %0, %3 : vector<1x16x256xf32>
    %cst = arith.constant dense<0.000000e+00> : vector<1x256xf32>
    %5 = vector.multi_reduction <add>, %4, %cst [1] : vector<1x16x256xf32> to vector<1x256xf32>
    %6 = vector.shape_cast %5 : vector<1x256xf32> to vector<1x1x256xf32>
    %c0_4 = arith.constant 0 : index
    %7 = memref.load %arg3[%c0_4] : memref<1xf32, #tpu.memory_space<smem>>
    %8 = vector.broadcast %7 : f32 to vector<1x1x256xf32>
    %9 = arith.addf %6, %8 : vector<1x1x256xf32>
    %cst_5 = arith.constant dense<0xFF800000> : vector<1x1xf32>
    %10 = vector.multi_reduction <maximumf>, %9, %cst_5 [2] : vector<1x1x256xf32> to vector<1x1xf32>
    %11 = vector.shape_cast %10 : vector<1x1xf32> to vector<1x1x1xf32>
    %12 = vector.broadcast %11 : vector<1x1x1xf32> to vector<1x1x256xf32>
    %13 = arith.subf %9, %12 : vector<1x1x256xf32>
    %14 = math.exp %13 : vector<1x1x256xf32>
    %cst_6 = arith.constant dense<0.000000e+00> : vector<1x1xf32>
    %15 = vector.multi_reduction <add>, %14, %cst_6 [2] : vector<1x1x256xf32> to vector<1x1xf32>
    %16 = vector.shape_cast %15 : vector<1x1xf32> to vector<1x1x1xf32>
    %17 = vector.shape_cast %16 : vector<1x1x1xf32> to vector<1x1xf32>
    %18 = tpu.reciprocal %17 : vector<1x1xf32> -> vector<1x1xf32>
    %19 = vector.broadcast %14 : vector<1x1x256xf32> to vector<1x16x256xf32>
    %20 = arith.mulf %0, %19 : vector<1x16x256xf32>
    %cst_7 = arith.constant dense<0.000000e+00> : vector<1x16xf32>
    %21 = vector.multi_reduction <add>, %20, %cst_7 [2] : vector<1x16x256xf32> to vector<1x16xf32>
    %22 = vector.broadcast %18 : vector<1x1xf32> to vector<1x16xf32>
    %23 = arith.mulf %21, %22 : vector<1x16xf32>
    %c0_8 = arith.constant 0 : index
    %c0_9 = arith.constant 0 : index
    %24 = vector.load %arg4[%c0_8, %c0_9] : memref<16x8xf32, #tpu.memory_space<vmem>>, vector<16x8xf32>
    %cst_10 = arith.constant dense<0.000000e+00> : vector<1x8xf32>
    %25 = tpu.matmul %23, %24, %cst_10 {dimension_numbers = #tpu.dot_dimension_numbers<[1], [0], [0], [1], [0, 0, 1, 1], [], []>} : vector<1x16xf32>, vector<16x8xf32>, vector<1x8xf32> -> vector<1x8xf32>
    %c0_11 = arith.constant 0 : index
    %c0_12 = arith.constant 0 : index
    %26 = vector.load %arg5[%c0_11, %c0_12] : memref<1x8xf32, #tpu.memory_space<vmem>>, vector<1x8xf32>
    %27 = arith.addf %25, %26 : vector<1x8xf32>
    %cst_13 = arith.constant dense<0.000000e+00> : vector<1xf32>
    %28 = vector.multi_reduction <add>, %27, %cst_13 [1] : vector<1x8xf32> to vector<1xf32>
    %29 = vector.shape_cast %28 : vector<1xf32> to vector<1x1xf32>
    %cst_14 = arith.constant 8.000000e+00 : f32
    %30 = vector.broadcast %cst_14 : f32 to vector<1x1xf32>
    %31 = arith.divf %29, %30 : vector<1x1xf32>
    %32 = vector.broadcast %31 : vector<1x1xf32> to vector<1x8xf32>
    %33 = arith.subf %27, %32 : vector<1x8xf32>
    %34 = arith.mulf %33, %33 : vector<1x8xf32>
    %cst_15 = arith.constant dense<0.000000e+00> : vector<1xf32>
    %35 = vector.multi_reduction <add>, %34, %cst_15 [1] : vector<1x8xf32> to vector<1xf32>
    %36 = vector.shape_cast %35 : vector<1xf32> to vector<1x1xf32>
    %cst_16 = arith.constant 8.000000e+00 : f32
    %37 = vector.broadcast %cst_16 : f32 to vector<1x1xf32>
    %38 = arith.divf %36, %37 : vector<1x1xf32>
    %39 = vector.broadcast %31 : vector<1x1xf32> to vector<1x8xf32>
    %40 = arith.subf %27, %39 : vector<1x8xf32>
    %cst_17 = arith.constant 9.99999974E-6 : f32
    %41 = vector.broadcast %cst_17 : f32 to vector<1x1xf32>
    %42 = arith.addf %38, %41 : vector<1x1xf32>
    %43 = math.rsqrt %42 : vector<1x1xf32>
    %44 = vector.broadcast %43 : vector<1x1xf32> to vector<1x8xf32>
    %45 = arith.mulf %40, %44 : vector<1x8xf32>
    %c0_18 = arith.constant 0 : index
    %c0_19 = arith.constant 0 : index
    %46 = vector.load %arg6[%c0_18, %c0_19] : memref<1x8xf32, #tpu.memory_space<vmem>>, vector<1x8xf32>
    %47 = arith.mulf %45, %46 : vector<1x8xf32>
    %c0_20 = arith.constant 0 : index
    %c0_21 = arith.constant 0 : index
    %48 = vector.load %arg7[%c0_20, %c0_21] : memref<1x8xf32, #tpu.memory_space<vmem>>, vector<1x8xf32>
    %49 = arith.addf %47, %48 : vector<1x8xf32>
    %cst_22 = arith.constant 0.000000e+00 : f32
    %50 = vector.broadcast %cst_22 : f32 to vector<1x8xf32>
    %51 = arith.maximumf %49, %50 : vector<1x8xf32>
    %c0_23 = arith.constant 0 : index
    %c0_24 = arith.constant 0 : index
    %52 = vector.load %arg8[%c0_23, %c0_24] : memref<8x16xf32, #tpu.memory_space<vmem>>, vector<8x16xf32>
    %cst_25 = arith.constant dense<0.000000e+00> : vector<1x16xf32>
    %53 = tpu.matmul %51, %52, %cst_25 {dimension_numbers = #tpu.dot_dimension_numbers<[1], [0], [0], [1], [0, 0, 1, 1], [], []>} : vector<1x8xf32>, vector<8x16xf32>, vector<1x16xf32> -> vector<1x16xf32>
    %c0_26 = arith.constant 0 : index
    %c0_27 = arith.constant 0 : index
    %54 = vector.load %arg9[%c0_26, %c0_27] : memref<1x16xf32, #tpu.memory_space<vmem>>, vector<1x16xf32>
    %55 = arith.addf %53, %54 : vector<1x16xf32>
    %56 = vector.shape_cast %55 : vector<1x16xf32> to vector<1x16x1xf32>
    %57 = vector.broadcast %56 : vector<1x16x1xf32> to vector<1x16x256xf32>
    %58 = arith.addf %0, %57 : vector<1x16x256xf32>
    %c0_28 = arith.constant 0 : index
    %c0_29 = arith.constant 0 : index
    %c0_30 = arith.constant 0 : index
    %59 = vector.load %arg10[%c0_28, %c0_29, %c0_30] : memref<1x16x256xf32, #tpu.memory_space<vmem>>, vector<1x16x256xf32>
    tpu.vector_store %arg10[%c0_28, %c0_29, %c0_30], %58 {strides = array<i32>} : memref<1x16x256xf32, #tpu.memory_space<vmem>>, vector<1x16x256xf32>,
    return
  }
  func.func @transform_0(%arg0: i32) -> (i32, i32, i32) {
    %c0_i32 = arith.constant 0 : i32
    %c0_i32_0 = arith.constant 0 : i32
    %c0_i32_1 = arith.constant 0 : i32
    return %arg0, %c0_i32, %c0_i32_0 : i32, i32, i32
  }
  func.func @transform_1(%arg0: i32) -> (i32, i32) {
    %c0_i32 = arith.constant 0 : i32
    %c0_i32_0 = arith.constant 0 : i32
    %c0_i32_1 = arith.constant 0 : i32
    return %c0_i32, %c0_i32_0 : i32, i32
  }
  func.func @transform_2(%arg0: i32) -> i32 {
    %c0_i32 = arith.constant 0 : i32
    %c0_i32_0 = arith.constant 0 : i32
    return %c0_i32 : i32
  }
  func.func @transform_3(%arg0: i32) -> (i32, i32) {
    %c0_i32 = arith.constant 0 : i32
    %c0_i32_0 = arith.constant 0 : i32
    %c0_i32_1 = arith.constant 0 : i32
    return %c0_i32, %c0_i32_0 : i32, i32
  }
  func.func @transform_4(%arg0: i32) -> (i32, i32) {
    %c0_i32 = arith.constant 0 : i32
    %c0_i32_0 = arith.constant 0 : i32
    %c0_i32_1 = arith.constant 0 : i32
    return %c0_i32, %c0_i32_0 : i32, i32
  }
  func.func @transform_5(%arg0: i32) -> (i32, i32) {
    %c0_i32 = arith.constant 0 : i32
    %c0_i32_0 = arith.constant 0 : i32
    %c0_i32_1 = arith.constant 0 : i32
    return %c0_i32, %c0_i32_0 : i32, i32
  }
  func.func @transform_6(%arg0: i32) -> (i32, i32) {
    %c0_i32 = arith.constant 0 : i32
    %c0_i32_0 = arith.constant 0 : i32
    %c0_i32_1 = arith.constant 0 : i32
    return %c0_i32, %c0_i32_0 : i32, i32
  }
  func.func @transform_7(%arg0: i32) -> (i32, i32) {
    %c0_i32 = arith.constant 0 : i32
    %c0_i32_0 = arith.constant 0 : i32
    %c0_i32_1 = arith.constant 0 : i32
    return %c0_i32, %c0_i32_0 : i32, i32
  }
  func.func @transform_8(%arg0: i32) -> (i32, i32) {
    %c0_i32 = arith.constant 0 : i32
    %c0_i32_0 = arith.constant 0 : i32
    %c0_i32_1 = arith.constant 0 : i32
    return %c0_i32, %c0_i32_0 : i32, i32
  }
  func.func @transform_9(%arg0: i32) -> (i32, i32, i32) {
    %c0_i32 = arith.constant 0 : i32
    %c0_i32_0 = arith.constant 0 : i32
    %c0_i32_1 = arith.constant 0 : i32
    return %arg0, %c0_i32, %c0_i32_0 : i32, i32, i32
  }
}

</mosaic_0001>

<llo_original>
// kernel: tpu_custom_call.1
$region0: #{tpu_custom_call.1}
  #allocation0 [shape = 'u32[]', space=smem, size = 0x4, offset = 0x4, fixed_abs, tag = 'smem constant byte address 0x4 - core index']
  #allocation1 [shape = 'u32[144,128]{1,0:T(1,128)}', space=vmem, size = 0x12000, scoped, tag = 'internal scratch']
  #allocation2 [shape = 'f32[1]{0:T(128)S(6)}', space=smem, size = 0x200, scoped, tag = 'scoped memory for tpu_custom_call.1']
  %s0 = inlined_call_operand.hbm [shape: f32[2,16,256], index: 0, kind: input, shape index: {}]
  %s1 = inlined_call_operand.vmem [shape: f32[16,1], index: 1, kind: input, shape index: {}]
  %s2 = inlined_call_operand.<no memory space> [shape: f32[1], index: 2, kind: input, shape index: {}]
  %s3 = inlined_call_operand.vmem [shape: f32[16,8], index: 3, kind: input, shape index: {}]
  %s4 = inlined_call_operand.vmem [shape: f32[1,8], index: 4, kind: input, shape index: {}]
  %s5 = inlined_call_operand.vmem [shape: f32[1,8], index: 5, kind: input, shape index: {}]
  %s6 = inlined_call_operand.vmem [shape: f32[1,8], index: 6, kind: input, shape index: {}]
  %s7 = inlined_call_operand.vmem [shape: f32[8,16], index: 7, kind: input, shape index: {}]
  %s8 = inlined_call_operand.vmem [shape: f32[1,16], index: 8, kind: input, shape index: {}]
  %s9 = inlined_call_operand.hbm [shape: f32[2,16,256], index: 9, kind: output, shape index: {}]
  %s10 = sld [smem:[#allocation0]]
  $region73: #{tpu_custom_call.1} parent=0
    _
  %s12 = ssub.s32 1, %s10
  %s13 = scalar_select 0, %s12, %s10
  %14 = sst [smem:[#allocation2]] %s2
  $region1: #{tpu_custom_call.1} parent=0
    #allocation3 [shape = 'u8[32768]{0}', space=vmem, size = 0x8000, scoped, tag = 'input window, operand 0']
    #allocation4 [shape = 's32[2]{0}', space=sflag, size = 0x8, scoped, tag = 'scoped memory for tpu_custom_call.1']
    #allocation5 [shape = 's32[2]{0}', space=sflag, size = 0x8, scoped, tag = 'scoped memory for tpu_custom_call.1']
    #allocation6 [shape = 'u8[32768]{0}', space=vmem, size = 0x8000, scoped, tag = 'output window, operand 0']
    %15 = vsyncpa [#allocation4], 0
    %s16 = scalar_lea.sflag [#allocation4], 1
    %17 = vsyncpa %s16, 0
    %18 = vsyncpa [#allocation5], 0
    %s19 = scalar_lea.sflag [#allocation5], 1
    %20 = vsyncpa %s19, 0
    loop: start=0, step=1, limit=4
    $region2: #{tpu_custom_call.1} parent=1 // loop_pre_header
      _
    $region3: #{tpu_custom_call.1} parent=1 // loop_header
      %s22 = sphi 0, %s26
      %p23 = scmp.ge.s32.totalorder %s22, 4
      %s32 = sphi 0, %s34
      %s35 = sphi 0, %s32
      %s36 = sphi 0, %s35
      %s52 = sphi 0, %s36
      %s56 = sphi 0, %s56
      %s58 = sphi 0, %s56
      %s59 = sphi 0, %s58
      %s73 = sphi 0, %s59
      %s77 = sphi 0, %s77
      %s79 = sphi 0, %s77
      %s80 = sphi 0, %s79
      %s94 = sphi 0, %s80
      %s98 = sphi 0, %s98
      %s100 = sphi 0, %s98
      %s101 = sphi 0, %s100
      %s115 = sphi 0, %s101
      %s119 = sphi 0, %s119
      %s121 = sphi 0, %s119
      %s122 = sphi 0, %s121
      %s136 = sphi 0, %s122
      %s140 = sphi 0, %s140
      %s142 = sphi 0, %s140
      %s143 = sphi 0, %s142
      %s157 = sphi 0, %s143
      %s161 = sphi 0, %s161
      %s163 = sphi 0, %s161
      %s164 = sphi 0, %s163
      %s178 = sphi 0, %s164
      %s182 = sphi 0, %s182
      %s184 = sphi 0, %s182
      %s185 = sphi 0, %s184
      %s199 = sphi 0, %s185
      %s203 = sphi 0, %s203
      %s205 = sphi 0, %s203
      %s206 = sphi 0, %s205
      %s220 = sphi 0, %s206
      %s226 = sphi 0, %s228
      %s229 = sphi 0, %s226
      %s230 = sphi 0, %s229
      %s246 = sphi 0, %s230
    $region4: #{tpu_custom_call.1} parent=1 // loop_header_branch
      %25 = sbr.rel (%p23) target = $region8
    $region5: #{tpu_custom_call.1} parent=1 // loop_body
      %s27 = ssub.s32 %s22, 1
      %s28 = ssub.s32 %s22, 2
      %s29 = sadd.s32 %s22, 1
      %s30 = ssub.s32 %s22, %s29
      %p31 = scmp.eq.s32.totalorder %s30, 0
      %s33 = sadd.s32 %s32, 1
      %s34 = scalar_select %p31, %s32, %s33
      %p37 = pneg %p31
      %p38 = scmp.eq.s32.totalorder %s22, 1
      %p39 = por %p37, %p38
      %p40 = scmp.ne.s32.totalorder %s32, %s35
      %p41 = scmp.eq.s32.totalorder %s22, 0
      %p42 = por %p40, %p41
      %p43 = scmp.ne.s32.totalorder %s32, %s35
      %p44 = scmp.eq.s32.totalorder %s27, 1
      %p45 = por %p43, %p44
      %p46 = scmp.ne.s32.totalorder %s35, %s36
      %p47 = scmp.eq.s32.totalorder %s27, 0
      %p48 = por %p46, %p47
      %p49 = scmp.ne.s32.totalorder %s35, %s36
      %p50 = scmp.eq.s32.totalorder %s28, 1
      %p51 = por %p49, %p50
      %p53 = scmp.ne.s32.totalorder %s36, %s52
      %p54 = scmp.eq.s32.totalorder %s28, 0
      %p55 = por %p53, %p54
      %s57 = sadd.s32 %s56, 1
      %p60 = scmp.eq.s32.totalorder %s22, 1
      %p61 = scmp.ne.s32.totalorder %s56, %s58
      %p62 = scmp.eq.s32.totalorder %s22, 0
      %p63 = por %p61, %p62
      %p64 = scmp.ne.s32.totalorder %s56, %s58
      %p65 = scmp.eq.s32.totalorder %s27, 1
      %p66 = por %p64, %p65
      %p67 = scmp.ne.s32.totalorder %s58, %s59
      %p68 = scmp.eq.s32.totalorder %s27, 0
      %p69 = por %p67, %p68
      %p70 = scmp.ne.s32.totalorder %s58, %s59
      %p71 = scmp.eq.s32.totalorder %s28, 1
      %p72 = por %p70, %p71
      %p74 = scmp.ne.s32.totalorder %s59, %s73
      %p75 = scmp.eq.s32.totalorder %s28, 0
      %p76 = por %p74, %p75
      %s78 = sadd.s32 %s77, 1
      %p81 = scmp.eq.s32.totalorder %s22, 1
      %p82 = scmp.ne.s32.totalorder %s77, %s79
      %p83 = scmp.eq.s32.totalorder %s22, 0
      %p84 = por %p82, %p83
      %p85 = scmp.ne.s32.totalorder %s77, %s79
      %p86 = scmp.eq.s32.totalorder %s27, 1
      %p87 = por %p85, %p86
      %p88 = scmp.ne.s32.totalorder %s79, %s80
      %p89 = scmp.eq.s32.totalorder %s27, 0
      %p90 = por %p88, %p89
      %p91 = scmp.ne.s32.totalorder %s79, %s80
      %p92 = scmp.eq.s32.totalorder %s28, 1
      %p93 = por %p91, %p92
      %p95 = scmp.ne.s32.totalorder %s80, %s94
      %p96 = scmp.eq.s32.totalorder %s28, 0
      %p97 = por %p95, %p96
      %s99 = sadd.s32 %s98, 1
      %p102 = scmp.eq.s32.totalorder %s22, 1
      %p103 = scmp.ne.s32.totalorder %s98, %s100
      %p104 = scmp.eq.s32.totalorder %s22, 0
      %p105 = por %p103, %p104
      %p106 = scmp.ne.s32.totalorder %s98, %s100
      %p107 = scmp.eq.s32.totalorder %s27, 1
      %p108 = por %p106, %p107
      %p109 = scmp.ne.s32.totalorder %s100, %s101
      %p110 = scmp.eq.s32.totalorder %s27, 0
      %p111 = por %p109, %p110
      %p112 = scmp.ne.s32.totalorder %s100, %s101
      %p113 = scmp.eq.s32.totalorder %s28, 1
      %p114 = por %p112, %p113
      %p116 = scmp.ne.s32.totalorder %s101, %s115
      %p117 = scmp.eq.s32.totalorder %s28, 0
      %p118 = por %p116, %p117
      %s120 = sadd.s32 %s119, 1
      %p123 = scmp.eq.s32.totalorder %s22, 1
      %p124 = scmp.ne.s32.totalorder %s119, %s121
      %p125 = scmp.eq.s32.totalorder %s22, 0
      %p126 = por %p124, %p125
      %p127 = scmp.ne.s32.totalorder %s119, %s121
      %p128 = scmp.eq.s32.totalorder %s27, 1
      %p129 = por %p127, %p128
      %p130 = scmp.ne.s32.totalorder %s121, %s122
      %p131 = scmp.eq.s32.totalorder %s27, 0
      %p132 = por %p130, %p131
      %p133 = scmp.ne.s32.totalorder %s121, %s122
      %p134 = scmp.eq.s32.totalorder %s28, 1
      %p135 = por %p133, %p134
      %p137 = scmp.ne.s32.totalorder %s122, %s136
      %p138 = scmp.eq.s32.totalorder %s28, 0
      %p139 = por %p137, %p138
      %s141 = sadd.s32 %s140, 1
      %p144 = scmp.eq.s32.totalorder %s22, 1
      %p145 = scmp.ne.s32.totalorder %s140, %s142
      %p146 = scmp.eq.s32.totalorder %s22, 0
      %p147 = por %p145, %p146
      %p148 = scmp.ne.s32.totalorder %s140, %s142
      %p149 = scmp.eq.s32.totalorder %s27, 1
      %p150 = por %p148, %p149
      %p151 = scmp.ne.s32.totalorder %s142, %s143
      %p152 = scmp.eq.s32.totalorder %s27, 0
      %p153 = por %p151, %p152
      %p154 = scmp.ne.s32.totalorder %s142, %s143
      %p155 = scmp.eq.s32.totalorder %s28, 1
      %p156 = por %p154, %p155
      %p158 = scmp.ne.s32.totalorder %s143, %s157
      %p159 = scmp.eq.s32.totalorder %s28, 0
      %p160 = por %p158, %p159
      %s162 = sadd.s32 %s161, 1
      %p165 = scmp.eq.s32.totalorder %s22, 1
      %p166 = scmp.ne.s32.totalorder %s161, %s163
      %p167 = scmp.eq.s32.totalorder %s22, 0
      %p168 = por %p166, %p167
      %p169 = scmp.ne.s32.totalorder %s161, %s163
      %p170 = scmp.eq.s32.totalorder %s27, 1
      %p171 = por %p169, %p170
      %p172 = scmp.ne.s32.totalorder %s163, %s164
      %p173 = scmp.eq.s32.totalorder %s27, 0
      %p174 = por %p172, %p173
      %p175 = scmp.ne.s32.totalorder %s163, %s164
      %p176 = scmp.eq.s32.totalorder %s28, 1
      %p177 = por %p175, %p176
      %p179 = scmp.ne.s32.totalorder %s164, %s178
      %p180 = scmp.eq.s32.totalorder %s28, 0
      %p181 = por %p179, %p180
      %s183 = sadd.s32 %s182, 1
      %p186 = scmp.eq.s32.totalorder %s22, 1
      %p187 = scmp.ne.s32.totalorder %s182, %s184
      %p188 = scmp.eq.s32.totalorder %s22, 0
      %p189 = por %p187, %p188
      %p190 = scmp.ne.s32.totalorder %s182, %s184
      %p191 = scmp.eq.s32.totalorder %s27, 1
      %p192 = por %p190, %p191
      %p193 = scmp.ne.s32.totalorder %s184, %s185
      %p194 = scmp.eq.s32.totalorder %s27, 0
      %p195 = por %p193, %p194
      %p196 = scmp.ne.s32.totalorder %s184, %s185
      %p197 = scmp.eq.s32.totalorder %s28, 1
      %p198 = por %p196, %p197
      %p200 = scmp.ne.s32.totalorder %s185, %s199
      %p201 = scmp.eq.s32.totalorder %s28, 0
      %p202 = por %p200, %p201
      %s204 = sadd.s32 %s203, 1
      %p207 = scmp.eq.s32.totalorder %s22, 1
      %p208 = scmp.ne.s32.totalorder %s203, %s205
      %p209 = scmp.eq.s32.totalorder %s22, 0
      %p210 = por %p208, %p209
      %p211 = scmp.ne.s32.totalorder %s203, %s205
      %p212 = scmp.eq.s32.totalorder %s27, 1
      %p213 = por %p211, %p212
      %p214 = scmp.ne.s32.totalorder %s205, %s206
      %p215 = scmp.eq.s32.totalorder %s27, 0
      %p216 = por %p214, %p215
      %p217 = scmp.ne.s32.totalorder %s205, %s206
      %p218 = scmp.eq.s32.totalorder %s28, 1
      %p219 = por %p217, %p218
      %p221 = scmp.ne.s32.totalorder %s206, %s220
      %p222 = scmp.eq.s32.totalorder %s28, 0
      %p223 = por %p221, %p222
      %s224 = ssub.s32 %s22, %s29
      %p225 = scmp.eq.s32.totalorder %s224, 0
      %s227 = sadd.s32 %s226, 1
      %s228 = scalar_select %p225, %s226, %s227
      %p231 = pneg %p225
      %p232 = scmp.eq.s32.totalorder %s22, 1
      %p233 = por %p231, %p232
      %p234 = scmp.ne.s32.totalorder %s226, %s229
      %p235 = scmp.eq.s32.totalorder %s22, 0
      %p236 = por %p234, %p235
      %p237 = scmp.ne.s32.totalorder %s226, %s229
      %p238 = scmp.eq.s32.totalorder %s27, 1
      %p239 = por %p237, %p238
      %p240 = scmp.ne.s32.totalorder %s229, %s230
      %p241 = scmp.eq.s32.totalorder %s27, 0
      %p242 = por %p240, %p241
      %p243 = scmp.ne.s32.totalorder %s229, %s230
      %p244 = scmp.eq.s32.totalorder %s28, 1
      %p245 = por %p243, %p244
      %p247 = scmp.ne.s32.totalorder %s230, %s246
      %p248 = scmp.eq.s32.totalorder %s28, 0
      %p249 = por %p247, %p248
      %p250 = scmp.le.s32.totalorder 1, %s22
      %p251 = scmp.lt.s32.totalorder %s22, 3
      %p252 = pnand %p250, %p251
      %p253 = pneg %p252
      // Predicated region
      $region9: #{tpu_custom_call.1} parent=5 // pred_check
        _
      $region10: #{tpu_custom_call.1} parent=5 // pred_check_branch
        %255 = sbr.rel (%p252) target = $region12
      $region11: #{tpu_custom_call.1} parent=5 // pred_region
        %s256 = ssub.s32 %s22, 1
        // Predicated region
        $region13: #{tpu_custom_call.1} parent=11 // pred_check
          %p257 = pneg %p69
        $region14: #{tpu_custom_call.1} parent=11 // pred_check_branch
          %259 = sbr.rel (%p257) target = $region16
        $region15: #{tpu_custom_call.1} parent=11 // pred_region
          _
        $region16: #{tpu_custom_call.1} parent=11 // pred_fallthru
          _
        // Predicated region
        $region17: #{tpu_custom_call.1} parent=11 // pred_check
          %p260 = pneg %p90
        $region18: #{tpu_custom_call.1} parent=11 // pred_check_branch
          %262 = sbr.rel (%p260) target = $region20
        $region19: #{tpu_custom_call.1} parent=11 // pred_region
          _
        $region20: #{tpu_custom_call.1} parent=11 // pred_fallthru
          _
        // Predicated region
        $region21: #{tpu_custom_call.1} parent=11 // pred_check
          %p263 = pneg %p111
        $region22: #{tpu_custom_call.1} parent=11 // pred_check_branch
          %265 = sbr.rel (%p263) target = $region24
        $region23: #{tpu_custom_call.1} parent=11 // pred_region
          _
        $region24: #{tpu_custom_call.1} parent=11 // pred_fallthru
          _
        // Predicated region
        $region25: #{tpu_custom_call.1} parent=11 // pred_check
          %p266 = pneg %p132
        $region26: #{tpu_custom_call.1} parent=11 // pred_check_branch
          %268 = sbr.rel (%p266) target = $region28
        $region27: #{tpu_custom_call.1} parent=11 // pred_region
          _
        $region28: #{tpu_custom_call.1} parent=11 // pred_fallthru
          _
        // Predicated region
        $region29: #{tpu_custom_call.1} parent=11 // pred_check
          %p269 = pneg %p153
        $region30: #{tpu_custom_call.1} parent=11 // pred_check_branch
          %271 = sbr.rel (%p269) target = $region32
        $region31: #{tpu_custom_call.1} parent=11 // pred_region
          _
        $region32: #{tpu_custom_call.1} parent=11 // pred_fallthru
          _
        // Predicated region
        $region33: #{tpu_custom_call.1} parent=11 // pred_check
          %p272 = pneg %p174
        $region34: #{tpu_custom_call.1} parent=11 // pred_check_branch
          %274 = sbr.rel (%p272) target = $region36
        $region35: #{tpu_custom_call.1} parent=11 // pred_region
          _
        $region36: #{tpu_custom_call.1} parent=11 // pred_fallthru
          _
        // Predicated region
        $region37: #{tpu_custom_call.1} parent=11 // pred_check
          %p275 = pneg %p195
        $region38: #{tpu_custom_call.1} parent=11 // pred_check_branch
          %277 = sbr.rel (%p275) target = $region40
        $region39: #{tpu_custom_call.1} parent=11 // pred_region
          _
        $region40: #{tpu_custom_call.1} parent=11 // pred_fallthru
          _
        // Predicated region
        $region41: #{tpu_custom_call.1} parent=11 // pred_check
          %p278 = pneg %p216
        $region42: #{tpu_custom_call.1} parent=11 // pred_check_branch
          %280 = sbr.rel (%p278) target = $region44
        $region43: #{tpu_custom_call.1} parent=11 // pred_region
          _
        $region44: #{tpu_custom_call.1} parent=11 // pred_fallthru
          _
      $region12: #{tpu_custom_call.1} parent=5 // pred_fallthru
        _
      %p281 = scmp.lt.s32.totalorder %s22, 2
      // Predicated region
      $region45: #{tpu_custom_call.1} parent=5 // pred_check
        %p282 = pneg %p281
      $region46: #{tpu_custom_call.1} parent=5 // pred_check_branch
        %284 = sbr.rel (%p282) target = $region48
      $region47: #{tpu_custom_call.1} parent=5 // pred_region
        // Predicated region
        $region49: #{tpu_custom_call.1} parent=47 // pred_check
          %p285 = pneg %p42
        $region50: #{tpu_custom_call.1} parent=47 // pred_check_branch
          %287 = sbr.rel (%p285) target = $region52
        $region51: #{tpu_custom_call.1} parent=47 // pred_region
          %s288 = sand.u32 %s32, 1
          %s289 = scalar_lea.sflag [#allocation4], %s288
          %s290 = sand.u32 %s32, 1
          %s291 = smul.addr %s290, 32
          %s292 = scalar_lea.vmem [#allocation3], %s291
          %s294 = ssub.s32 512, 512
          %295 = vsyncadd %s289, %s294
          %s296 = smul.addr %s22, 4
          %s297 = smul.addr %s296, 128
          %s298 = scalar_lea.hbm %s0, %s297
          %s299 = sshll.u32 %s292, 4
          %s300 = int_to_ptr.vmem [resolvable:$true] %s299
          %305 = dma.hbm_to_vmem [thread:$0]  %s298, 512, %s300, %s289, 256, 256, 16
        $region52: #{tpu_custom_call.1} parent=47 // pred_fallthru
          _
      $region48: #{tpu_custom_call.1} parent=5 // pred_fallthru
        _
      %p306 = scmp.le.s32.totalorder 1, %s22
      %p307 = scmp.lt.s32.totalorder %s22, 3
      %p308 = pnand %p306, %p307
      %p309 = pneg %p308
      // Predicated region
      $region53: #{tpu_custom_call.1} parent=5 // pred_check
        _
      $region54: #{tpu_custom_call.1} parent=5 // pred_check_branch
        %311 = sbr.rel (%p308) target = $region56
      $region55: #{tpu_custom_call.1} parent=5 // pred_region
        %s312 = ssub.s32 %s22, 1
        %s313 = sand.u32 %s35, 1
        %s314 = scalar_lea.sflag [#allocation4], %s313
        %s315 = sand.u32 %s35, 1
        %s316 = smul.addr %s315, 32
        %s317 = scalar_lea.vmem [#allocation3], %s316
        // Predicated region
        $region57: #{tpu_custom_call.1} parent=55 // pred_check
          %p318 = pneg %p48
        $region58: #{tpu_custom_call.1} parent=55 // pred_check_branch
          %320 = sbr.rel (%p318) target = $region60
        $region59: #{tpu_custom_call.1} parent=55 // pred_region
          %321 = dma.done %s314, 512
        $region60: #{tpu_custom_call.1} parent=55 // pred_fallthru
          _
        %s322 = sand.u32 %s35, 1
        %s323 = scalar_lea.sflag [#allocation4], %s322
        %s324 = sand.u32 %s35, 1
        %s325 = smul.addr %s324, 32
        %s326 = scalar_lea.vmem [#allocation3], %s325
        %p327 = pneg %p48
        %p328 = pneg %p45
        %p329 = pneg %p69
        %p330 = pneg %p66
        %p331 = pneg %p90
        %p332 = pneg %p87
        %p333 = pneg %p111
        %p334 = pneg %p108
        %p335 = pneg %p132
        %p336 = pneg %p129
        %p337 = pneg %p153
        %p338 = pneg %p150
        %p339 = pneg %p174
        %p340 = pneg %p171
        %p341 = pneg %p195
        %p342 = pneg %p192
        %p343 = pneg %p216
        %p344 = pneg %p213
        %p345 = pneg %p242
        %p346 = pneg %p239
        %s347 = sand.u32 %s229, 1
        %s348 = scalar_lea.sflag [#allocation5], %s347
        %s349 = sand.u32 %s229, 1
        %s350 = smul.addr %s349, 32
        %s351 = scalar_lea.vmem [#allocation6], %s350
        %v352 = vld [vmem:[%s317] sm:$0xff]
        %v353 = vld [vmem:[%s317 + $0x8] sm:$0xff]
        %v354 = vld [vmem:[%s317 + $0x10] sm:$0xff]
        %v355 = vld [vmem:[%s317 + $0x18] sm:$0xff]
        %v356 = vld [vmem:[%s1] sm:$0xff]
        %v357 = vld [vmem:[%s1 + $0x8] sm:$0xff]
        %359 = vset.pattern.permute.xlu0 0
        %360 = vperm.xlu0 %359, %v356
        %v361 = vpop.permute.xlu0 %360
        %364 = vset.pattern.permute.xlu0 0
        %365 = vperm.xlu0 %364, %v357
        %v366 = vpop.permute.xlu0 %365
        %v368 = vmul.f32 %v352, %v361
        %v369 = vmul.f32 %v353, %v361
        %v370 = vmul.f32 %v354, %v366
        %v371 = vmul.f32 %v355, %v366
        %v372 = vadd.f32 %v368, %v370
        %v373 = vrot.slane %v372, 4
        %v374 = vadd.f32 %v372, %v373
        %v375 = vrot.slane %v374, 2
        %v376 = vadd.f32 %v374, %v375
        %v377 = vrot.slane %v376, 1
        %v378 = vadd.f32 %v376, %v377
        %v379 = vadd.f32 %v369, %v371
        %v380 = vrot.slane %v379, 4
        %v381 = vadd.f32 %v379, %v380
        %v382 = vrot.slane %v381, 2
        %v383 = vadd.f32 %v381, %v382
        %v384 = vrot.slane %v383, 1
        %v385 = vadd.f32 %v383, %v384
        %s386 = sld [smem:[#allocation2]]
        %v387 = vstv %s386
        %v388 = vadd.f32 %v378, %v387
        %v389 = vadd.f32 %v385, %v387
        %v390 = vmax.f32 %v388, %v389
        %391 = vmax.xlane.f32.xlu0 %v390
        %v392 = vpop.xlane.xlu0 %391
        %v393 = vsub.f32 %v388, %v392
        %v394 = vsub.f32 %v389, %v392
        %v395 = vmul.f32 %v393, 1.442695
        %v396 = vpow.pop %v395
        %v397 = vmul.f32 %v394, 1.442695
        %v398 = vpow.pop %v397
        %v399 = vadd.f32 %v396, %v398
        %400 = vadd.xlane.f32.xlu0 %v399
        %v401 = vpop.xlane.xlu0 %400
        %v402 = vrcp.pop %v401
        %v403 = vmul.f32 %v352, %v396
        %v404 = vmul.f32 %v353, %v398
        %v405 = vmul.f32 %v354, %v396
        %v406 = vmul.f32 %v355, %v398
        %v407 = vadd.f32 %v403, %v404
        %408 = vadd.xlane.f32.xlu0 %v407
        %v409 = vpop.xlane.xlu0 %408
        %v410 = vadd.f32 %v405, %v406
        %411 = vadd.xlane.f32.xlu0 %v410
        %v412 = vpop.xlane.xlu0 %411
        %v413 = vmul.f32 %v409, %v402
        %v414 = vmul.f32 %v412, %v402
        %v415 = vld [vmem:[%s3] sm:$0xff]
        %v416 = vld [vmem:[%s3 + $0x8] sm:$0xff]
        %v417 = vld [vmem:[%s4] sm:$0x1]
        %v420 = vlaneseq
        %v421 = vand.u32 %v420, 127
        %v422 = vlaneseq
        %v423 = vshrl.u32 %v422, 7
        %v424 = vsub.s32 %v421, %v423
        %v425 = vrot.slane %v413, %v424
        %v426 = vadd.s32 %v421, 4294967288
        %v427 = vlaneseq
        %v428 = vshrl.u32 %v427, 7
        %v429 = vsub.s32 %v426, %v428
        %v430 = vrot.slane %v414, %v429
        %vm431 = vcmask 130112
        %v432 = vsel %vm431, %v430, %v425
        %vm433 = vcmask 130048
        %v434 = vsel %vm433, %v432, 0
        %436 = vmatprep.subr.mxu0 0.0
        %437 = vmatpush1.msra.mxu0 %v415
        %438 = vmatprep.subr.mxu0 0.0
        %439 = vmatpush1.msra.mxu0 %v416
        %440 = vmatprep.subr.mxu0 0.0
        %441 = vmatpush1.msra.mxu0 0.0
        %442 = vmatprep.subr.mxu0 0.0
        %443 = vmatpush1.msra.mxu0 0.0
        %444 = vmatprep.subr.mxu0 0.0
        %445 = vmatpush1.msra.mxu0 0.0
        %446 = vmatprep.subr.mxu0 0.0
        %447 = vmatpush1.msra.mxu0 0.0
        %448 = vmatprep.subr.mxu0 0.0
        %449 = vmatpush1.msra.mxu0 0.0
        %450 = vmatprep.subr.mxu0 0.0
        %451 = vmatpush1.msra.mxu0 0.0
        %452 = vmatprep.subr.mxu0 0.0
        %453 = vmatpush1.msra.mxu0 0.0
        %454 = vmatprep.subr.mxu0 0.0
        %455 = vmatpush1.msra.mxu0 0.0
        %456 = vmatprep.subr.mxu0 0.0
        %457 = vmatpush1.msra.mxu0 0.0
        %458 = vmatprep.subr.mxu0 0.0
        %459 = vmatpush1.msra.mxu0 0.0
        %460 = vmatprep.subr.mxu0 0.0
        %461 = vmatpush1.msra.mxu0 0.0
        %462 = vmatprep.subr.mxu0 0.0
        %463 = vmatpush1.msra.mxu0 0.0
        %464 = vmatprep.subr.mxu0 0.0
        %465 = vmatpush1.msra.mxu0 0.0
        %466 = vmatprep.subr.mxu0 0.0
        %467 = vmatpush1.msra.mxu0 0.0
        %468 = vmatprep.subr.mxu0 0.0
        %469 = vmatpush1.msra.mxu0 0.0
        %470 = vmatprep.subr.mxu0 0.0
        %471 = vmatpush1.msra.mxu0 0.0
        %472 = vmatprep.subr.mxu0 0.0
        %473 = vmatpush1.msra.mxu0 0.0
        %474 = vmatprep.subr.mxu0 0.0
        %475 = vmatpush1.msra.mxu0 0.0
        %476 = vmatprep.subr.mxu0 0.0
        %477 = vmatpush1.msra.mxu0 0.0
        %478 = vmatprep.subr.mxu0 0.0
        %479 = vmatpush1.msra.mxu0 0.0
        %480 = vmatprep.subr.mxu0 0.0
        %481 = vmatpush1.msra.mxu0 0.0
        %482 = vmatprep.subr.mxu0 0.0
        %483 = vmatpush1.msra.mxu0 0.0
        %484 = vmatprep.subr.mxu0 0.0
        %485 = vmatpush1.msra.mxu0 0.0
        %486 = vmatprep.subr.mxu0 0.0
        %487 = vmatpush1.msra.mxu0 0.0
        %488 = vmatprep.subr.mxu0 0.0
        %489 = vmatpush1.msra.mxu0 0.0
        %490 = vmatprep.subr.mxu0 0.0
        %491 = vmatpush1.msra.mxu0 0.0
        %492 = vmatprep.subr.mxu0 0.0
        %493 = vmatpush1.msra.mxu0 0.0
        %494 = vmatprep.subr.mxu0 0.0
        %495 = vmatpush1.msra.mxu0 0.0
        %496 = vmatprep.subr.mxu0 0.0
        %497 = vmatpush1.msra.mxu0 0.0
        %498 = vmatprep.subr.mxu0 0.0
        %499 = vmatpush1.msra.mxu0 0.0
        %500 = vmatprep.mubr.f32.mxu0 0.0
        %501 = vmatmul.mubr.f32.gmra.mrb[0].mxu0 %v434
        %v502 = vpop.f32.mrb[0].mxu0
        %v503 = vadd.f32 %v417, %v502
        %v504 = vpop.f32.mrb[0].mxu0
        %505 = vdwg.mxu0
        %vm506 = vcmask 57344
        %v507 = vsel %vm506, %v503, 0.0
        %508 = vadd.xlane.f32.xlu0 %v507
        %v509 = vpop.xlane.xlu0 %508
        %v510 = vrcp.pop 8.0
        %v511 = vmul.f32 %v509, %v510
        %v512 = vsub.f32 %v503, %v511
        %v513 = vmul.f32 %v512, %v512
        %v514 = vsel %vm506, %v513, 0.0
        %515 = vadd.xlane.f32.xlu0 %v514
        %v516 = vpop.xlane.xlu0 %515
        %v517 = vmul.f32 %v516, %v510
        %v518 = vadd.f32 %v517, 1e-05
        %v519 = vrsqrt.pop %v518
        %v520 = vmul.f32 %v512, %v519
        %v521 = vld [vmem:[%s5] sm:$0x1]
        %v522 = vmul.f32 %v520, %v521
        %v523 = vld [vmem:[%s6] sm:$0x1]
        %v524 = vadd.f32 %v522, %v523
        %v525 = vmax.f32 %v524, 0.0
        %v526 = vld [vmem:[%s7] sm:$0xff]
        %v527 = vld [vmem:[%s8] sm:$0x1]
        %vm528 = vcmask 64512
        %v530 = vsel %vm528, %v525, 0
        %532 = vmatprep.subr.mxu0 0.0
        %533 = vmatpush1.msra.mxu0 %v526
        %534 = vmatprep.subr.mxu0 0.0
        %535 = vmatpush1.msra.mxu0 0.0
        %536 = vmatprep.subr.mxu0 0.0
        %537 = vmatpush1.msra.mxu0 0.0
        %538 = vmatprep.subr.mxu0 0.0
        %539 = vmatpush1.msra.mxu0 0.0
        %540 = vmatprep.subr.mxu0 0.0
        %541 = vmatpush1.msra.mxu0 0.0
        %542 = vmatprep.subr.mxu0 0.0
        %543 = vmatpush1.msra.mxu0 0.0
        %544 = vmatprep.subr.mxu0 0.0
        %545 = vmatpush1.msra.mxu0 0.0
        %546 = vmatprep.subr.mxu0 0.0
        %547 = vmatpush1.msra.mxu0 0.0
        %548 = vmatprep.subr.mxu0 0.0
        %549 = vmatpush1.msra.mxu0 0.0
        %550 = vmatprep.subr.mxu0 0.0
        %551 = vmatpush1.msra.mxu0 0.0
        %552 = vmatprep.subr.mxu0 0.0
        %553 = vmatpush1.msra.mxu0 0.0
        %554 = vmatprep.subr.mxu0 0.0
        %555 = vmatpush1.msra.mxu0 0.0
        %556 = vmatprep.subr.mxu0 0.0
        %557 = vmatpush1.msra.mxu0 0.0
        %558 = vmatprep.subr.mxu0 0.0
        %559 = vmatpush1.msra.mxu0 0.0
        %560 = vmatprep.subr.mxu0 0.0
        %561 = vmatpush1.msra.mxu0 0.0
        %562 = vmatprep.subr.mxu0 0.0
        %563 = vmatpush1.msra.mxu0 0.0
        %564 = vmatprep.subr.mxu0 0.0
        %565 = vmatpush1.msra.mxu0 0.0
        %566 = vmatprep.subr.mxu0 0.0
        %567 = vmatpush1.msra.mxu0 0.0
        %568 = vmatprep.subr.mxu0 0.0
        %569 = vmatpush1.msra.mxu0 0.0
        %570 = vmatprep.subr.mxu0 0.0
        %571 = vmatpush1.msra.mxu0 0.0
        %572 = vmatprep.subr.mxu0 0.0
        %573 = vmatpush1.msra.mxu0 0.0
        %574 = vmatprep.subr.mxu0 0.0
        %575 = vmatpush1.msra.mxu0 0.0
        %576 = vmatprep.subr.mxu0 0.0
        %577 = vmatpush1.msra.mxu0 0.0
        %578 = vmatprep.subr.mxu0 0.0
        %579 = vmatpush1.msra.mxu0 0.0
        %580 = vmatprep.subr.mxu0 0.0
        %581 = vmatpush1.msra.mxu0 0.0
        %582 = vmatprep.subr.mxu0 0.0
        %583 = vmatpush1.msra.mxu0 0.0
        %584 = vmatprep.subr.mxu0 0.0
        %585 = vmatpush1.msra.mxu0 0.0
        %586 = vmatprep.subr.mxu0 0.0
        %587 = vmatpush1.msra.mxu0 0.0
        %588 = vmatprep.subr.mxu0 0.0
        %589 = vmatpush1.msra.mxu0 0.0
        %590 = vmatprep.subr.mxu0 0.0
        %591 = vmatpush1.msra.mxu0 0.0
        %592 = vmatprep.subr.mxu0 0.0
        %593 = vmatpush1.msra.mxu0 0.0
        %594 = vmatprep.subr.mxu0 0.0
        %595 = vmatpush1.msra.mxu0 0.0
        %596 = vmatprep.mubr.f32.mxu0 0.0
        %597 = vmatmul.mubr.f32.gmra.mrb[0].mxu0 %v530
        %v598 = vpop.f32.mrb[0].mxu0
        %v599 = vadd.f32 %v527, %v598
        %v600 = vpop.f32.mrb[0].mxu0
        %601 = vdwg.mxu0
        %v602 = vlaneseq
        %v603 = vshrl.u32 %v602, 7
        %v604 = vsub.s32 0, %v603
        %v605 = vrot.slane %v599, %v604
        %607 = vbcast.lane.b32.xlu0 %v605, 256
        %v608 = vpop.permute.xlu0 %607
        %s610 = sor.u32 256, 8
        %611 = vbcast.lane.b32.xlu0 %v605, %s610
        %v612 = vpop.permute.xlu0 %611
        %v613 = vadd.f32 %v352, %v608
        %v614 = vadd.f32 %v353, %v608
        %v615 = vadd.f32 %v354, %v612
        %v616 = vadd.f32 %v355, %v612
        %617 = vst [vmem:[%s351] sm:$0xff] %v613
        %618 = vst [vmem:[%s351 + $0x8] sm:$0xff] %v614
        %619 = vst [vmem:[%s351 + $0x10] sm:$0xff] %v615
        %620 = vst [vmem:[%s351 + $0x18] sm:$0xff] %v616
        %s621 = sand.u32 %s229, 1
        %s622 = scalar_lea.sflag [#allocation5], %s621
        %s623 = sand.u32 %s229, 1
        %s624 = smul.addr %s623, 32
        %s625 = scalar_lea.vmem [#allocation6], %s624
        // Predicated region
        $region61: #{tpu_custom_call.1} parent=55 // pred_check
          %p626 = pneg %p239
        $region62: #{tpu_custom_call.1} parent=55 // pred_check_branch
          %628 = sbr.rel (%p626) target = $region64
        $region63: #{tpu_custom_call.1} parent=55 // pred_region
          %s630 = ssub.s32 512, 512
          %631 = vsyncadd %s622, %s630
          %s632 = smul.addr %s27, 4
          %s633 = smul.addr %s632, 128
          %s634 = scalar_lea.hbm %s9, %s633
          %s635 = sshll.u32 %s625, 4
          %s636 = int_to_ptr.vmem [resolvable:$true] %s635
          %641 = dma.vmem_to_hbm [thread:$0]  %s636, 512, %s634, %s622, 256, 256, 16
        $region64: #{tpu_custom_call.1} parent=55 // pred_fallthru
          _
      $region56: #{tpu_custom_call.1} parent=5 // pred_fallthru
        _
      %p642 = scmp.le.s32.totalorder 2, %s22
      // Predicated region
      $region65: #{tpu_custom_call.1} parent=5 // pred_check
        %p643 = pneg %p642
      $region66: #{tpu_custom_call.1} parent=5 // pred_check_branch
        %645 = sbr.rel (%p643) target = $region68
      $region67: #{tpu_custom_call.1} parent=5 // pred_region
        %s646 = ssub.s32 %s22, 2
        // Predicated region
        $region69: #{tpu_custom_call.1} parent=67 // pred_check
          %p647 = pneg %p245
        $region70: #{tpu_custom_call.1} parent=67 // pred_check_branch
          %649 = sbr.rel (%p647) target = $region72
        $region71: #{tpu_custom_call.1} parent=67 // pred_region
          %s650 = sand.u32 %s230, 1
          %s651 = scalar_lea.sflag [#allocation5], %s650
          %s652 = sand.u32 %s230, 1
          %s653 = smul.addr %s652, 32
          %s654 = scalar_lea.vmem [#allocation6], %s653
          %655 = dma.done %s651, 512
        $region72: #{tpu_custom_call.1} parent=67 // pred_fallthru
          _
      $region68: #{tpu_custom_call.1} parent=5 // pred_fallthru
        _
    $region6: #{tpu_custom_call.1} parent=1 // loop_footer
      %s26 = sadd.s32 1, %s22
    $region7: #{tpu_custom_call.1} parent=1 // loop_footer_branch
      %21 = sbr.rel target = $region3
    $region8: #{tpu_custom_call.1} parent=1 // loop_exit
      _
    %656 = vsyncpa [#allocation4], 1
    %s657 = scalar_lea.sflag [#allocation4], 1
    %658 = vsyncpa %s657, 1
    %659 = vsyncpa [#allocation5], 1
    %s660 = scalar_lea.sflag [#allocation5], 1
    %661 = vsyncpa %s660, 1

</llo_original>
